<compile_context>
chip_gen: v6e
topology: v6e:2x2x1
jax: 0.10.0
libtpu: 0.0.40
codegen_flags: <defaults>
</compile_context>

<pallas_src>
import numpy as np

import jax
import jax.numpy as jnp
from jax.experimental import pallas as pl
from jax.experimental.pallas import tpu as pltpu


# ----------------------------------------------------------------------------
# Kernel: single fused GEMM, lane-dense output store.
# ----------------------------------------------------------------------------
def _trend_basis_kernel(theta_ref, w_ref, out_ref):
    # theta_ref: (BB, K)   K = P*(1+Q)          (full theta rows for this tile)
    # w_ref:     (K, N)    N = Tb + Tf*Q        (resident across grid steps)
    # out_ref:   (BB, N)   columns [:Tb] = backcast, [Tb:] = forecast (t, q)-major
    out_ref[...] = jnp.dot(
        theta_ref[...], w_ref[...], preferred_element_type=jnp.float32
    ).astype(out_ref.dtype)


# ----------------------------------------------------------------------------
# Tiling / budget helpers
# ----------------------------------------------------------------------------
def _round_up(x: int, m: int) -> int:
    return (x + m - 1) // m * m


def _pick_batch_block(B: int, K: int, N: int) -> int:
    if B <= 1024:
        return B  # single grid step; per-step overhead irrelevant at this size
    # Double-buffered (input tile + output tile) against a ~24 MiB budget.
    bytes_per_row = 4 * (K + N)
    bb_vmem = max(8, (24 * 1024 * 1024 // (2 * bytes_per_row)) // 8 * 8)
    bb = min(4096, bb_vmem)
    # Keep at least 2 grid steps so the v7x megacore can shard the parallel axis.
    half = _round_up(pl.cdiv(B, 2), 8)
    return max(8, min(bb, half))


def _vmem_limit_bytes(BB: int, K: int, N: int) -> int:
    tile_bytes = 4 * BB * (K + N)          # one input tile + one output tile
    w_bytes = 4 * K * N                    # resident combined weight
    need = 2 * tile_bytes + 2 * w_bytes + (1 << 20)   # double-buffered + slack
    return int(min(max(need, 16 << 20), 48 << 20))    # stay under v7x's 64 MiB


# ----------------------------------------------------------------------------
# Wrapper
# ----------------------------------------------------------------------------
def trend_basis_forward(theta, combined_weight, backcast_size, forecast_size,
                        out_features, batch_block=None):
    """theta: (B, P*(1+Q)) -> (backcast (B, Tb), forecast (B, Tf, Q))."""
    B, K = theta.shape
    Kw, N = combined_weight.shape
    Tb, Tf, Q = backcast_size, forecast_size, out_features
    assert Kw == K, "theta width must be P*(1+out_features)"
    assert N == Tb + Tf * Q

    BB = batch_block if batch_block is not None else _pick_batch_block(B, K, N)
    grid = (pl.cdiv(B, BB),)

    out = pl.pallas_call(
        _trend_basis_kernel,
        out_shape=jax.ShapeDtypeStruct((B, N), theta.dtype),
        grid_spec=pltpu.PrefetchScalarGridSpec(
            num_scalar_prefetch=0,
            grid=grid,
            in_specs=[
                pl.BlockSpec((BB, K), lambda i: (i, 0)),   # theta tile
                pl.BlockSpec((K, N), lambda i: (0, 0)),    # combined weight (resident)
            ],
            out_specs=pl.BlockSpec((BB, N), lambda i: (i, 0)),
        ),
        compiler_params=pltpu.CompilerParams(
            dimension_semantics=("parallel",),
            vmem_limit_bytes=_vmem_limit_bytes(BB, K, N),
        ),
        cost_estimate=pl.CostEstimate(
            flops=2 * B * K * N,
            transcendentals=0,
            bytes_accessed=4 * (B * K + K * N + B * N),
        ),
    )(theta, combined_weight)

    backcast = out[:, :Tb]                       # (B, Tb)
    forecast = out[:, Tb:].reshape(B, Tf, Q)     # (B, Tf, Q) -- (t, q)-major cols
    return backcast, forecast


# ----------------------------------------------------------------------------
# Module (mirrors the PyTorch TrendBasis; bases are non-trainable constants)
# ----------------------------------------------------------------------------
def _poly_basis(size: int, polynomial_size: int) -> np.ndarray:
    t = np.arange(size, dtype=float) / size
    rows = [np.power(t, i)[None, :] for i in range(polynomial_size)]
    return np.concatenate(rows, axis=0).astype(np.float32)


class TrendBasis:
    def __init__(self, degree_of_polynomial: int, backcast_size: int,
                 forecast_size: int, out_features: int = 1):
        polynomial_size = degree_of_polynomial + 1
        self.out_features = out_features
        self.backcast_size = backcast_size
        self.forecast_size = forecast_size

        bb = _poly_basis(backcast_size, polynomial_size)   # (P, Tb)
        fb = _poly_basis(forecast_size, polynomial_size)   # (P, Tf)
        self.backcast_basis = jnp.asarray(bb)
        self.forecast_basis = jnp.asarray(fb)

        # Combined weight: (P*(1+Q), Tb + Tf*Q)
        #   W[:P, :Tb]                   = backcast_basis
        #   W[P + p*Q + q, Tb + t*Q + q] = forecast_basis[p, t]
        P, Q = polynomial_size, out_features
        K = P * (1 + Q)
        N = backcast_size + forecast_size * Q
        W = np.zeros((K, N), dtype=np.float32)
        W[:P, :backcast_size] = bb
        W[P:, backcast_size:] = np.kron(fb, np.eye(Q, dtype=np.float32))
        self.combined_weight = jnp.asarray(W)

    def __call__(self, theta, batch_block=None):
        return trend_basis_forward(
            theta, self.combined_weight, self.backcast_size,
            self.forecast_size, self.out_features, batch_block=batch_block)


# ----------------------------------------------------------------------------
# Reference (pure JAX) for sanity checking
# ----------------------------------------------------------------------------
def _ref_forward(theta, backcast_basis, forecast_basis, out_features):
    B = theta.shape[0]
    P = backcast_basis.shape[0]
    backcast = jnp.einsum('bp,pt->bt', theta[:, :P], backcast_basis)
    forecast = jnp.einsum('bpq,pt->btq',
                          theta[:, P:].reshape(B, P, out_features),
                          forecast_basis)
    return backcast, forecast


if __name__ == "__main__":
    key = jax.random.PRNGKey(0)

    configs = [
        # (batch, degree, backcast_size, forecast_size, out_features, forced_block)
        (2, 3, 16, 8, 1, None),     # whole batch in one step
        (5, 2, 24, 12, 3, None),    # Q > 1
        (20, 3, 16, 8, 2, 8),       # multi-step grid + partial last batch tile
    ]

    for cfg_idx, (B, degree, Tb, Tf, Q, blk) in enumerate(configs):
        P = degree + 1
        key, sub = jax.random.split(key)
        theta = jax.random.normal(sub, (B, P * (1 + Q)), jnp.float32)

        module = TrendBasis(degree_of_polynomial=degree, backcast_size=Tb,
                            forecast_size=Tf, out_features=Q)

        backcast, forecast = module(theta, batch_block=blk)
        jax.block_until_ready(backcast)
        jax.block_until_ready(forecast)

        bc_ref, fc_ref = _ref_forward(
            theta, module.backcast_basis, module.forecast_basis, Q)

        assert backcast.shape == (B, Tb), backcast.shape
        assert forecast.shape == (B, Tf, Q), forecast.shape
        assert jnp.allclose(backcast, bc_ref, atol=1e-4, rtol=1e-4), \
            f"backcast mismatch in config {cfg_idx}"
        assert jnp.allclose(forecast, fc_ref, atol=1e-4, rtol=1e-4), \
            f"forecast mismatch in config {cfg_idx}"

    print("KERNEL_OK")
</pallas_src>

<mosaic_0001>
module attributes {stable_mosaic.version = 11 : i64} {
  func.func @_trend_basis_kernel(%arg0: i32, %arg1: memref<2x8xf32, #tpu.memory_space<vmem>>, %arg2: memref<8x24xf32, #tpu.memory_space<vmem>>, %arg3: memref<2x24xf32, #tpu.memory_space<vmem>>) attributes {dimension_semantics = [#tpu.dimension_semantics<parallel>], iteration_bounds = array<i64: 1>, scalar_prefetch = 0 : i64, scratch_operands = 0 : i64, tpu.core_type = #tpu.core_type<tc>, window_params = [{transform_indices = @transform_0, window_bounds = array<i64: 2, 8>}, {pipeline_mode = #tpu.pipeline_mode<synchronous>, transform_indices = @transform_1, window_bounds = array<i64: 8, 24>}, {transform_indices = @transform_2, window_bounds = array<i64: 2, 24>}]} {
    %c0 = arith.constant 0 : index
    %c0_0 = arith.constant 0 : index
    %0 = vector.load %arg1[%c0, %c0_0] : memref<2x8xf32, #tpu.memory_space<vmem>>, vector<2x8xf32>
    %c0_1 = arith.constant 0 : index
    %c0_2 = arith.constant 0 : index
    %1 = vector.load %arg2[%c0_1, %c0_2] : memref<8x24xf32, #tpu.memory_space<vmem>>, vector<8x24xf32>
    %cst = arith.constant dense<0.000000e+00> : vector<2x24xf32>
    %2 = tpu.matmul %0, %1, %cst {dimension_numbers = #tpu.dot_dimension_numbers<[1], [0], [0], [1], [0, 0, 1, 1], [], []>} : vector<2x8xf32>, vector<8x24xf32>, vector<2x24xf32> -> vector<2x24xf32>
    %c0_3 = arith.constant 0 : index
    %c0_4 = arith.constant 0 : index
    %3 = vector.load %arg3[%c0_3, %c0_4] : memref<2x24xf32, #tpu.memory_space<vmem>>, vector<2x24xf32>
    tpu.vector_store %arg3[%c0_3, %c0_4], %2 {strides = array<i32>} : memref<2x24xf32, #tpu.memory_space<vmem>>, vector<2x24xf32>,
    return
  }
  func.func @transform_0(%arg0: i32) -> (i32, i32) {
    %c0_i32 = arith.constant 0 : i32
    %c0_i32_0 = arith.constant 0 : i32
    return %arg0, %c0_i32 : i32, i32
  }
  func.func @transform_1(%arg0: i32) -> (i32, i32) {
    %c0_i32 = arith.constant 0 : i32
    %c0_i32_0 = arith.constant 0 : i32
    %c0_i32_1 = arith.constant 0 : i32
    return %c0_i32, %c0_i32_0 : i32, i32
  }
  func.func @transform_2(%arg0: i32) -> (i32, i32) {
    %c0_i32 = arith.constant 0 : i32
    %c0_i32_0 = arith.constant 0 : i32
    return %arg0, %c0_i32 : i32, i32
  }
}

</mosaic_0001>

<llo_original>
// kernel: tpu_custom_call.1
$region0: #{tpu_custom_call.1}
  #allocation0 [shape = 'u32[]', space=smem, size = 0x4, offset = 0x4, fixed_abs, tag = 'smem constant byte address 0x4 - core index']
  #allocation1 [shape = 'u32[144,128]{1,0:T(1,128)}', space=vmem, size = 0x12000, scoped, tag = 'internal scratch']
  %s0 = inlined_call_operand.hbm [shape: f32[2,8], index: 0, kind: input, shape index: {}]
  %s1 = inlined_call_operand.hbm [shape: f32[8,24], index: 1, kind: input, shape index: {}]
  %s2 = inlined_call_operand.hbm [shape: f32[2,24], index: 2, kind: output, shape index: {}]
  %s3 = sld [smem:[#allocation0]]
  $region26: #{tpu_custom_call.1} parent=0
    _
  %s5 = ssub.s32 1, %s3
  %s6 = scalar_select 0, %s5, %s3
  $region1: #{tpu_custom_call.1} parent=0
    #allocation2 [shape = 'u8[1024]{0}', space=vmem, size = 0x400, scoped, tag = 'input window, operand 0, single buffered']
    #allocation3 [shape = 's32[1]{0}', space=sflag, size = 0x4, scoped, tag = 'scoped memory for tpu_custom_call.1']
    #allocation4 [shape = 's32[1]{0}', space=sflag, size = 0x4, scoped, tag = 'scoped memory for tpu_custom_call.1']
    #allocation5 [shape = 'u8[4096]{0}', space=vmem, size = 0x1000, scoped, tag = 'input window, operand 1, single buffered']
    #allocation6 [shape = 's32[1]{0}', space=sflag, size = 0x4, scoped, tag = 'scoped memory for tpu_custom_call.1']
    #allocation7 [shape = 'u8[1024]{0}', space=vmem, size = 0x400, scoped, tag = 'output window, operand 0, single buffered']
    %7 = vsyncpa [#allocation3], 0
    %8 = vsyncpa [#allocation6], 0
    %9 = vsyncpa [#allocation4], 0
    // Predicated region
    $region2: #{tpu_custom_call.1} parent=1 // pred_check
      _
    $region3: #{tpu_custom_call.1} parent=1 // pred_check_branch
      %11 = sbr.rel (0) target = $region5
    $region4: #{tpu_custom_call.1} parent=1 // pred_region
      %s13 = ssub.s32 32, 32
      %14 = vsyncadd [#allocation3], %s13
      %s16 = sshll.u32 [#allocation2], 4
      %s17 = int_to_ptr.vmem [resolvable:$true] %s16
      %19 = dma.hbm_to_vmem [thread:$0]  %s0, 32, %s17, [#allocation3]
    $region5: #{tpu_custom_call.1} parent=1 // pred_fallthru
      _
    // Predicated region
    $region6: #{tpu_custom_call.1} parent=1 // pred_check
      _
    $region7: #{tpu_custom_call.1} parent=1 // pred_check_branch
      %21 = sbr.rel (0) target = $region9
    $region8: #{tpu_custom_call.1} parent=1 // pred_region
      %s23 = ssub.s32 128, 128
      %24 = vsyncadd [#allocation6], %s23
      %s26 = sshll.u32 [#allocation5], 4
      %s27 = int_to_ptr.vmem [resolvable:$true] %s26
      %29 = dma.hbm_to_vmem [thread:$0]  %s1, 128, %s27, [#allocation6]
    $region9: #{tpu_custom_call.1} parent=1 // pred_fallthru
      _
    // Predicated region
    $region10: #{tpu_custom_call.1} parent=1 // pred_check
      _
    $region11: #{tpu_custom_call.1} parent=1 // pred_check_branch
      %31 = sbr.rel (0) target = $region13
    $region12: #{tpu_custom_call.1} parent=1 // pred_region
      %32 = dma.done [#allocation3], 32
    $region13: #{tpu_custom_call.1} parent=1 // pred_fallthru
      _
    // Predicated region
    $region14: #{tpu_custom_call.1} parent=1 // pred_check
      _
    $region15: #{tpu_custom_call.1} parent=1 // pred_check_branch
      %34 = sbr.rel (0) target = $region17
    $region16: #{tpu_custom_call.1} parent=1 // pred_region
      %35 = dma.done [#allocation6], 128
    $region17: #{tpu_custom_call.1} parent=1 // pred_fallthru
      _
    %v36 = vld [vmem:[#allocation2] sm:$0x3]
    %v37 = vld [vmem:[#allocation5] sm:$0xff]
    %vm38 = vcmask 64512
    %v40 = vsel %vm38, %v36, 0
    %42 = vmatprep.subr.mxu0 0.0
    %43 = vmatpush1.msra.mxu0 0.0
    %44 = vmatprep.subr.mxu0 0.0
    %45 = vmatpush1.msra.mxu0 0.0
    %46 = vmatprep.subr.mxu0 0.0
    %47 = vmatpush1.msra.mxu0 0.0
    %48 = vmatprep.subr.mxu0 0.0
    %49 = vmatpush1.msra.mxu0 0.0
    %50 = vmatprep.subr.mxu0 0.0
    %51 = vmatpush1.msra.mxu0 0.0
    %52 = vmatprep.subr.mxu0 0.0
    %53 = vmatpush1.msra.mxu0 0.0
    %54 = vmatprep.subr.mxu0 0.0
    %55 = vmatpush1.msra.mxu0 0.0
    %56 = vmatprep.subr.mxu0 0.0
    %57 = vmatpush1.msra.mxu0 0.0
    %58 = vmatprep.subr.mxu0 0.0
    %59 = vmatpush1.msra.mxu0 0.0
    %60 = vmatprep.subr.mxu0 0.0
    %61 = vmatpush1.msra.mxu0 0.0
    %62 = vmatprep.subr.mxu0 0.0
    %63 = vmatpush1.msra.mxu0 0.0
    %64 = vmatprep.subr.mxu0 0.0
    %65 = vmatpush1.msra.mxu0 0.0
    %66 = vmatprep.subr.mxu0 0.0
    %67 = vmatpush1.msra.mxu0 0.0
    %68 = vmatprep.subr.mxu0 0.0
    %69 = vmatpush1.msra.mxu0 0.0
    %70 = vmatprep.subr.mxu0 0.0
    %71 = vmatpush1.msra.mxu0 0.0
    %72 = vmatprep.subr.mxu0 0.0
    %73 = vmatpush1.msra.mxu0 %v37
    %74 = vmatprep.subr.mxu0 0.0
    %75 = vmatpush2.msra.mxu0 0.0
    %76 = vmatprep.subr.mxu0 0.0
    %77 = vmatpush2.msra.mxu0 0.0
    %78 = vmatprep.subr.mxu0 0.0
    %79 = vmatpush2.msra.mxu0 0.0
    %80 = vmatprep.subr.mxu0 0.0
    %81 = vmatpush2.msra.mxu0 0.0
    %82 = vmatprep.subr.mxu0 0.0
    %83 = vmatpush2.msra.mxu0 0.0
    %84 = vmatprep.subr.mxu0 0.0
    %85 = vmatpush2.msra.mxu0 0.0
    %86 = vmatprep.subr.mxu0 0.0
    %87 = vmatpush2.msra.mxu0 0.0
    %88 = vmatprep.subr.mxu0 0.0
    %89 = vmatpush2.msra.mxu0 0.0
    %90 = vmatprep.subr.mxu0 0.0
    %91 = vmatpush2.msra.mxu0 0.0
    %92 = vmatprep.subr.mxu0 0.0
    %93 = vmatpush2.msra.mxu0 0.0
    %94 = vmatprep.subr.mxu0 0.0
    %95 = vmatpush2.msra.mxu0 0.0
    %96 = vmatprep.subr.mxu0 0.0
    %97 = vmatpush2.msra.mxu0 0.0
    %98 = vmatprep.subr.mxu0 0.0
    %99 = vmatpush2.msra.mxu0 0.0
    %100 = vmatprep.subr.mxu0 0.0
    %101 = vmatpush2.msra.mxu0 0.0
    %102 = vmatprep.subr.mxu0 0.0
    %103 = vmatpush2.msra.mxu0 0.0
    %104 = vmatprep.subr.mxu0 0.0
    %105 = vmatpush2.msra.mxu0 0.0
    %106 = vmatprep.mubr.f32.mxu0 0.0
    %107 = vmatmul.mubr.f32.gmra.mxu0 %v40
    %v108 = vpop.f32.mrf.mxu0
    %v109 = vadd.f32 0.0, %v108
    %v110 = vpop.f32.mrf.mxu0
    %111 = vdwg.mxu0
    %vm112 = vcmask 189440
    %113 = vst.msk [vmem:[#allocation7] sm:$0x3] %vm112, %v109
    // Predicated region
    $region18: #{tpu_custom_call.1} parent=1 // pred_check
      _
    $region19: #{tpu_custom_call.1} parent=1 // pred_check_branch
      %115 = sbr.rel (0) target = $region21
    $region20: #{tpu_custom_call.1} parent=1 // pred_region
      %s117 = ssub.s32 32, 32
      %118 = vsyncadd [#allocation4], %s117
      %s120 = sshll.u32 [#allocation7], 4
      %s121 = int_to_ptr.vmem [resolvable:$true] %s120
      %123 = dma.vmem_to_hbm [thread:$0]  %s121, 32, %s2, [#allocation4]
    $region21: #{tpu_custom_call.1} parent=1 // pred_fallthru
      _
    // Predicated region
    $region22: #{tpu_custom_call.1} parent=1 // pred_check
      _
    $region23: #{tpu_custom_call.1} parent=1 // pred_check_branch
      %125 = sbr.rel (0) target = $region25
    $region24: #{tpu_custom_call.1} parent=1 // pred_region
      %126 = dma.done [#allocation4], 32
    $region25: #{tpu_custom_call.1} parent=1 // pred_fallthru
      _
    %127 = vsyncpa [#allocation3], 1
    %128 = vsyncpa [#allocation6], 1
    %129 = vsyncpa [#allocation4], 1

</llo_original>
